<compile_context>
chip_gen: v5e
topology: v5e:2x2
jax: 0.10.0
libtpu: 0.0.40
codegen_flags: <defaults>
</compile_context>

<pallas_src>
import functools

import jax
import jax.numpy as jnp
from jax.experimental import pallas as pl
from jax.experimental.pallas import tpu as pltpu

HIDDEN_PAD = 128   # hidden dim padded to a full lane width
OUT_PAD = 128      # fused head width in-VMEM (policy | value | zeros); never hits HBM


def actor_critic_kernel(x_ref, w1_ref, b1_ref, wh_ref, bh_ref, pi_ref, v_ref, *,
                        action_dim):
    # Hidden layer: Linear + ReLU (one MXU pass, lane-padded hidden).
    x = x_ref[...]
    h = jnp.dot(x, w1_ref[...], preferred_element_type=jnp.float32) + b1_ref[...]
    h = jnp.maximum(h, 0.0)

    # Fused heads: one MXU pass gives [tb, 128] with
    #   lanes [0, action_dim)   -> policy logits
    #   lane  action_dim        -> value
    #   lanes (action_dim, 128) -> zero padding
    logits = jnp.dot(h, wh_ref[...], preferred_element_type=jnp.float32) + bh_ref[...]

    # (1, OUT_PAD) lane mask: one vreg, broadcasts over the tile.
    lane = jax.lax.broadcasted_iota(jnp.int32, (1, OUT_PAD), 1)
    is_pi = lane < action_dim

    # Softmax over policy lanes only; padded/value lanes masked to -inf.
    masked = jnp.where(is_pi, logits, -jnp.inf)
    m = jnp.max(masked, axis=-1, keepdims=True)
    e = jnp.exp(masked - m)                          # exp(-inf) == 0 on masked lanes
    denom = jnp.sum(e, axis=-1, keepdims=True)
    r = pl.reciprocal(denom, approx=True)            # EUP slot
    r = r * (2.0 - denom * r)                        # one Newton step -> f32-exact
    probs = e * r

    # Narrow, low-HBM stores: policy lanes and the single value lane.
    pi_ref[...] = probs[:, :action_dim]
    v_ref[...] = logits[:, action_dim:action_dim + 1]


def prepare_params(params):
    """One-time padding / head fusion. Do NOT call per forward step."""
    w1, b1, w2, b2, w3, b3 = params
    f32 = jnp.float32
    state_dim, hidden = w1.shape
    action_dim = w2.shape[1]
    assert hidden <= HIDDEN_PAD and action_dim + 1 <= OUT_PAD

    # Lane-pad hidden to 128 (zero rows/cols contribute nothing after ReLU(0)=0).
    w1p = jnp.zeros((state_dim, HIDDEN_PAD), f32).at[:, :hidden].set(w1.astype(f32))
    b1p = jnp.zeros((1, HIDDEN_PAD), f32).at[:, :hidden].set(
        b1.reshape(1, -1).astype(f32))
    # Fuse policy + value heads into one padded [128, 128] weight / [1, 128] bias.
    wh = jnp.zeros((HIDDEN_PAD, OUT_PAD), f32)
    wh = wh.at[:hidden, :action_dim].set(w2.astype(f32))
    wh = wh.at[:hidden, action_dim].set(w3.reshape(-1).astype(f32))
    bh = jnp.zeros((1, OUT_PAD), f32)
    bh = bh.at[:, :action_dim].set(b2.reshape(1, -1).astype(f32))
    bh = bh.at[:, action_dim].set(b3.reshape(()).astype(f32))
    return (w1p, b1p, wh, bh, action_dim)


def _round_up(x, m):
    return ((x + m - 1) // m) * m


@functools.partial(jax.jit, static_argnames=("action_dim", "block_b"))
def _forward_impl(state, w1p, b1p, wh, bh, *, action_dim, block_b):
    B, state_dim = state.shape
    f32 = jnp.float32

    # Batch tile: as large as requested; ensure >= 2 grid steps when B >= 16 so the
    # "parallel" axis actually shards across both TensorCores on v7x.
    tb = min(block_b, B)
    if B >= 16:
        tb = min(tb, _round_up(pl.cdiv(B, 2), 8))
    if tb < B:
        tb = _round_up(tb, 8)        # keep the sublane dim a multiple of 8
    grid = (pl.cdiv(B, tb),)

    # Conditional scoped-VMEM bump (v5e default is 16 MiB); narrow outputs keep the
    # per-step footprint tiny, so this usually stays None.
    per_step_bytes = tb * (state_dim + action_dim + 1) * 4
    resident_bytes = 4 * (state_dim * HIDDEN_PAD + HIDDEN_PAD
                          + HIDDEN_PAD * OUT_PAD + OUT_PAD)
    vmem_est = 2 * 2 * per_step_bytes + resident_bytes
    vmem_limit = None
    if vmem_est > (12 << 20):
        vmem_limit = min(vmem_est + (8 << 20), 48 << 20)

    policy, value = pl.pallas_call(
        functools.partial(actor_critic_kernel, action_dim=action_dim),
        out_shape=(
            jax.ShapeDtypeStruct((B, action_dim), f32),
            jax.ShapeDtypeStruct((B, 1), f32),
        ),
        grid_spec=pltpu.PrefetchScalarGridSpec(
            num_scalar_prefetch=0,
            grid=grid,
            in_specs=[
                pl.BlockSpec((tb, state_dim), lambda i: (i, 0)),          # batch-tiled
                pl.BlockSpec((state_dim, HIDDEN_PAD), lambda i: (0, 0)),  # resident
                pl.BlockSpec((1, HIDDEN_PAD), lambda i: (0, 0)),
                pl.BlockSpec((HIDDEN_PAD, OUT_PAD), lambda i: (0, 0)),
                pl.BlockSpec((1, OUT_PAD), lambda i: (0, 0)),
            ],
            out_specs=[
                pl.BlockSpec((tb, action_dim), lambda i: (i, 0)),
                pl.BlockSpec((tb, 1), lambda i: (i, 0)),
            ],
        ),
        compiler_params=pltpu.CompilerParams(
            dimension_semantics=("parallel",),   # shard batch tiles across TCs on v7x
            vmem_limit_bytes=vmem_limit,
        ),
    )(state.astype(f32), w1p, b1p, wh, bh)
    return policy, value


def actor_critic_forward(state, prepared, block_b=4096):
    """state: [B, state_dim] f32.  prepared = prepare_params(params).
    Returns (policy [B, action_dim], value [B, 1])."""
    w1p, b1p, wh, bh, action_dim = prepared
    return _forward_impl(state, w1p, b1p, wh, bh,
                         action_dim=int(action_dim), block_b=int(block_b))


def init_params(key, state_dim, action_dim, hidden=64):
    """Deterministic init mimicking PyTorch's default U(-1/sqrt(fan_in), 1/sqrt(fan_in))."""
    ks = jax.random.split(key, 6)

    def uni(k, shape, fan_in):
        bound = 1.0 / jnp.sqrt(jnp.float32(fan_in))
        return jax.random.uniform(k, shape, jnp.float32, -bound, bound)

    w1 = uni(ks[0], (state_dim, hidden), state_dim)
    b1 = uni(ks[1], (1, hidden), state_dim)
    w2 = uni(ks[2], (hidden, action_dim), hidden)
    b2 = uni(ks[3], (1, action_dim), hidden)
    w3 = uni(ks[4], (hidden, 1), hidden)
    b3 = uni(ks[5], (1, 1), hidden)
    return (w1, b1, w2, b2, w3, b3)


if __name__ == "__main__":
    B, state_dim, action_dim = 8, 16, 4
    key = jax.random.PRNGKey(0)
    k_state, k_params = jax.random.split(key)

    state = jax.random.normal(k_state, (B, state_dim), jnp.float32)
    params = init_params(k_params, state_dim, action_dim)
    prepared = prepare_params(params)        # one-time padding / head fusion

    policy, value = actor_critic_forward(state, prepared)
    jax.block_until_ready((policy, value))

    # Reference check against plain JAX
    w1, b1, w2, b2, w3, b3 = params
    h_ref = jnp.maximum(state @ w1 + b1, 0.0)
    pi_ref = jax.nn.softmax(h_ref @ w2 + b2, axis=-1)
    v_ref = h_ref @ w3 + b3

    assert policy.shape == (B, action_dim) and value.shape == (B, 1)
    assert jnp.allclose(policy, pi_ref, atol=1e-5, rtol=1e-5)
    assert jnp.allclose(value, v_ref, atol=1e-5, rtol=1e-5)
    assert jnp.allclose(jnp.sum(policy, axis=-1), 1.0, atol=1e-5)

    print("KERNEL_OK")
</pallas_src>

<mosaic_0001>
module attributes {stable_mosaic.version = 11 : i64} {
  func.func @actor_critic_kernel(%arg0: i32, %arg1: memref<8x16xf32, #tpu.memory_space<vmem>>, %arg2: memref<16x128xf32, #tpu.memory_space<vmem>>, %arg3: memref<1x128xf32, #tpu.memory_space<vmem>>, %arg4: memref<128x128xf32, #tpu.memory_space<vmem>>, %arg5: memref<1x128xf32, #tpu.memory_space<vmem>>, %arg6: memref<8x4xf32, #tpu.memory_space<vmem>>, %arg7: memref<8x1xf32, #tpu.memory_space<vmem>>) attributes {dimension_semantics = [#tpu.dimension_semantics<parallel>], iteration_bounds = array<i64: 1>, scalar_prefetch = 0 : i64, scratch_operands = 0 : i64, tpu.core_type = #tpu.core_type<tc>, window_params = [{transform_indices = @transform_0, window_bounds = array<i64: 8, 16>}, {pipeline_mode = #tpu.pipeline_mode<synchronous>, transform_indices = @transform_1, window_bounds = array<i64: 16, 128>}, {pipeline_mode = #tpu.pipeline_mode<synchronous>, transform_indices = @transform_2, window_bounds = array<i64: 1, 128>}, {pipeline_mode = #tpu.pipeline_mode<synchronous>, transform_indices = @transform_3, window_bounds = array<i64: 128, 128>}, {pipeline_mode = #tpu.pipeline_mode<synchronous>, transform_indices = @transform_4, window_bounds = array<i64: 1, 128>}, {transform_indices = @transform_5, window_bounds = array<i64: 8, 4>}, {transform_indices = @transform_6, window_bounds = array<i64: 8, 1>}]} {
    %c0 = arith.constant 0 : index
    %c0_0 = arith.constant 0 : index
    %0 = vector.load %arg1[%c0, %c0_0] : memref<8x16xf32, #tpu.memory_space<vmem>>, vector<8x16xf32>
    %c0_1 = arith.constant 0 : index
    %c0_2 = arith.constant 0 : index
    %1 = vector.load %arg2[%c0_1, %c0_2] : memref<16x128xf32, #tpu.memory_space<vmem>>, vector<16x128xf32>
    %cst = arith.constant dense<0.000000e+00> : vector<8x128xf32>
    %2 = tpu.matmul %0, %1, %cst {dimension_numbers = #tpu.dot_dimension_numbers<[1], [0], [0], [1], [0, 0, 1, 1], [], []>} : vector<8x16xf32>, vector<16x128xf32>, vector<8x128xf32> -> vector<8x128xf32>
    %c0_3 = arith.constant 0 : index
    %c0_4 = arith.constant 0 : index
    %3 = vector.load %arg3[%c0_3, %c0_4] : memref<1x128xf32, #tpu.memory_space<vmem>>, vector<1x128xf32>
    %4 = vector.broadcast %3 : vector<1x128xf32> to vector<8x128xf32>
    %5 = arith.addf %2, %4 : vector<8x128xf32>
    %cst_5 = arith.constant 0.000000e+00 : f32
    %6 = vector.broadcast %cst_5 : f32 to vector<8x128xf32>
    %7 = arith.maximumf %5, %6 : vector<8x128xf32>
    %c0_6 = arith.constant 0 : index
    %c0_7 = arith.constant 0 : index
    %8 = vector.load %arg4[%c0_6, %c0_7] : memref<128x128xf32, #tpu.memory_space<vmem>>, vector<128x128xf32>
    %cst_8 = arith.constant dense<0.000000e+00> : vector<8x128xf32>
    %9 = tpu.matmul %7, %8, %cst_8 {dimension_numbers = #tpu.dot_dimension_numbers<[1], [0], [0], [1], [0, 0, 1, 1], [], []>} : vector<8x128xf32>, vector<128x128xf32>, vector<8x128xf32> -> vector<8x128xf32>
    %c0_9 = arith.constant 0 : index
    %c0_10 = arith.constant 0 : index
    %10 = vector.load %arg5[%c0_9, %c0_10] : memref<1x128xf32, #tpu.memory_space<vmem>>, vector<1x128xf32>
    %11 = vector.broadcast %10 : vector<1x128xf32> to vector<8x128xf32>
    %12 = arith.addf %9, %11 : vector<8x128xf32>
    %13 = tpu.iota {dimensions = array<i32: 1>} : vector<1x128xi32>
    %c4_i32 = arith.constant 4 : i32
    %14 = vector.broadcast %c4_i32 : i32 to vector<1x128xi32>
    %15 = arith.cmpi slt, %13, %14 : vector<1x128xi32>
    %cst_11 = arith.constant 0xFF800000 : f32
    %16 = vector.shape_cast %15 : vector<1x128xi1> to vector<1x128xi1>
    %17 = vector.broadcast %16 : vector<1x128xi1> to vector<8x128xi1>
    %18 = vector.broadcast %cst_11 : f32 to vector<8x128xf32>
    %19 = arith.select %17, %12, %18 : vector<8x128xi1>, vector<8x128xf32>
    %cst_12 = arith.constant dense<0xFF800000> : vector<8xf32>
    %20 = vector.multi_reduction <maximumf>, %19, %cst_12 [1] : vector<8x128xf32> to vector<8xf32>
    %21 = vector.shape_cast %20 : vector<8xf32> to vector<8x1xf32>
    %22 = vector.broadcast %21 : vector<8x1xf32> to vector<8x128xf32>
    %23 = arith.subf %19, %22 : vector<8x128xf32>
    %24 = math.exp %23 : vector<8x128xf32>
    %cst_13 = arith.constant dense<0.000000e+00> : vector<8xf32>
    %25 = vector.multi_reduction <add>, %24, %cst_13 [1] : vector<8x128xf32> to vector<8xf32>
    %26 = vector.shape_cast %25 : vector<8xf32> to vector<8x1xf32>
    %27 = tpu.reciprocal %26 {approx = true} : vector<8x1xf32> -> vector<8x1xf32>
    %28 = arith.mulf %26, %27 : vector<8x1xf32>
    %cst_14 = arith.constant 2.000000e+00 : f32
    %29 = vector.broadcast %cst_14 : f32 to vector<8x1xf32>
    %30 = arith.subf %29, %28 : vector<8x1xf32>
    %31 = arith.mulf %27, %30 : vector<8x1xf32>
    %32 = vector.broadcast %31 : vector<8x1xf32> to vector<8x128xf32>
    %33 = arith.mulf %24, %32 : vector<8x128xf32>
    %34 = vector.extract_strided_slice %33 {offsets = [0, 0], sizes = [8, 4], strides = [1, 1]} : vector<8x128xf32> to vector<8x4xf32>
    %c0_15 = arith.constant 0 : index
    %c0_16 = arith.constant 0 : index
    %35 = vector.load %arg6[%c0_15, %c0_16] : memref<8x4xf32, #tpu.memory_space<vmem>>, vector<8x4xf32>
    tpu.vector_store %arg6[%c0_15, %c0_16], %34 {strides = array<i32>} : memref<8x4xf32, #tpu.memory_space<vmem>>, vector<8x4xf32>,
    %36 = vector.extract_strided_slice %12 {offsets = [0, 4], sizes = [8, 1], strides = [1, 1]} : vector<8x128xf32> to vector<8x1xf32>
    %c0_17 = arith.constant 0 : index
    %c0_18 = arith.constant 0 : index
    %37 = vector.load %arg7[%c0_17, %c0_18] : memref<8x1xf32, #tpu.memory_space<vmem>>, vector<8x1xf32>
    tpu.vector_store %arg7[%c0_17, %c0_18], %36 {strides = array<i32>} : memref<8x1xf32, #tpu.memory_space<vmem>>, vector<8x1xf32>,
    return
  }
  func.func @transform_0(%arg0: i32) -> (i32, i32) {
    %c0_i32 = arith.constant 0 : i32
    %c0_i32_0 = arith.constant 0 : i32
    return %arg0, %c0_i32 : i32, i32
  }
  func.func @transform_1(%arg0: i32) -> (i32, i32) {
    %c0_i32 = arith.constant 0 : i32
    %c0_i32_0 = arith.constant 0 : i32
    %c0_i32_1 = arith.constant 0 : i32
    return %c0_i32, %c0_i32_0 : i32, i32
  }
  func.func @transform_2(%arg0: i32) -> (i32, i32) {
    %c0_i32 = arith.constant 0 : i32
    %c0_i32_0 = arith.constant 0 : i32
    %c0_i32_1 = arith.constant 0 : i32
    return %c0_i32, %c0_i32_0 : i32, i32
  }
  func.func @transform_3(%arg0: i32) -> (i32, i32) {
    %c0_i32 = arith.constant 0 : i32
    %c0_i32_0 = arith.constant 0 : i32
    %c0_i32_1 = arith.constant 0 : i32
    return %c0_i32, %c0_i32_0 : i32, i32
  }
  func.func @transform_4(%arg0: i32) -> (i32, i32) {
    %c0_i32 = arith.constant 0 : i32
    %c0_i32_0 = arith.constant 0 : i32
    %c0_i32_1 = arith.constant 0 : i32
    return %c0_i32, %c0_i32_0 : i32, i32
  }
  func.func @transform_5(%arg0: i32) -> (i32, i32) {
    %c0_i32 = arith.constant 0 : i32
    %c0_i32_0 = arith.constant 0 : i32
    return %arg0, %c0_i32 : i32, i32
  }
  func.func @transform_6(%arg0: i32) -> (i32, i32) {
    %c0_i32 = arith.constant 0 : i32
    %c0_i32_0 = arith.constant 0 : i32
    return %arg0, %c0_i32 : i32, i32
  }
}

</mosaic_0001>

<llo_original>
// kernel: _forward_impl.1
$region0: #{_forward_impl.1}
  #allocation0 [shape = 'u32[]', space=smem, size = 0x4, offset = 0x4, fixed_abs, tag = 'smem constant byte address 0x4 - core index']
  #allocation1 [shape = 'u32[72,128]{1,0:T(1,128)}', space=vmem, size = 0x9000, scoped, tag = 'internal scratch']
  %s0 = inlined_call_operand.hbm [shape: f32[8,16], index: 0, kind: input, shape index: {}]
  %s1 = inlined_call_operand.hbm [shape: f32[16,128], index: 1, kind: input, shape index: {}]
  %s2 = inlined_call_operand.vmem [shape: f32[1,128], index: 2, kind: input, shape index: {}]
  %s3 = inlined_call_operand.hbm [shape: f32[128,128], index: 3, kind: input, shape index: {}]
  %s4 = inlined_call_operand.vmem [shape: f32[1,128], index: 4, kind: input, shape index: {}]
  %s5 = inlined_call_operand.vmem [shape: f32[8,4], index: 5, kind: output, shape index: {0}]
  %s6 = inlined_call_operand.vmem [shape: f32[8,1], index: 6, kind: output, shape index: {1}]
  %7 = xla_tuple %s5, %s6
  %s8 = sld [smem:[#allocation0]]
  $region50: #{_forward_impl.1} parent=0
    _
  %s10 = ssub.s32 1, %s8
  %s11 = scalar_select 0, %s10, %s8
  $region1: #{_forward_impl.1} parent=0
    #allocation2 [shape = 'u8[4096]{0}', space=vmem, size = 0x1000, scoped, tag = 'input window, operand 0, single buffered']
    #allocation3 [shape = 's32[1]{0}', space=sflag, size = 0x4, scoped, tag = 'scoped memory for _forward_impl.1']
    #allocation4 [shape = 'u8[8192]{0}', space=vmem, size = 0x2000, scoped, tag = 'input window, operand 1, single buffered']
    #allocation5 [shape = 's32[1]{0}', space=sflag, size = 0x4, scoped, tag = 'scoped memory for _forward_impl.1']
    #allocation6 [shape = 'u8[65536]{0}', space=vmem, size = 0x10000, scoped, tag = 'input window, operand 3, single buffered']
    %12 = vsyncpa [#allocation3], 0
    %13 = vsyncpa [#allocation5], 0
    // Predicated region
    $region2: #{_forward_impl.1} parent=1 // pred_check
      _
    $region3: #{_forward_impl.1} parent=1 // pred_check_branch
      %15 = sbr.rel (0) target = $region5
    $region4: #{_forward_impl.1} parent=1 // pred_region
      %17 = vsyncadd [#allocation3], 0
      %s19 = sshll.u32 %s0, 4
      %s20 = int_to_ptr.hbm [resolvable:$true] %s19
      %s21 = sshll.u32 [#allocation2], 4
      %s22 = int_to_ptr.vmem [resolvable:$true] %s21
      %24 = dma.hbm_to_vmem [thread:$0]  %s20, 128, %s22, [#allocation3]
    $region5: #{_forward_impl.1} parent=1 // pred_fallthru
      _
    // Predicated region
    $region6: #{_forward_impl.1} parent=1 // pred_check
      _
    $region7: #{_forward_impl.1} parent=1 // pred_check_branch
      %26 = sbr.rel (0) target = $region9
    $region8: #{_forward_impl.1} parent=1 // pred_region
      %28 = vsyncadd [#allocation5], 0
      %s29 = sshll.u32 %s1, 4
      %s30 = int_to_ptr.hbm [resolvable:$true] %s29
      %s31 = sshll.u32 [#allocation4], 4
      %s32 = int_to_ptr.vmem [resolvable:$true] %s31
      %37 = dma.hbm_to_vmem [thread:$0]  %s30, 256, %s32, [#allocation5], 128, 128, 8
    $region9: #{_forward_impl.1} parent=1 // pred_fallthru
      _
    // Predicated region
    $region10: #{_forward_impl.1} parent=1 // pred_check
      _
    $region11: #{_forward_impl.1} parent=1 // pred_check_branch
      %39 = sbr.rel (0) target = $region13
    $region12: #{_forward_impl.1} parent=1 // pred_region
      _
    $region13: #{_forward_impl.1} parent=1 // pred_fallthru
      _
    // Predicated region
    $region14: #{_forward_impl.1} parent=1 // pred_check
      _
    $region15: #{_forward_impl.1} parent=1 // pred_check_branch
      %41 = sbr.rel (0) target = $region17
    $region16: #{_forward_impl.1} parent=1 // pred_region
      %43 = vsyncadd [#allocation5], 0
      %s44 = sshll.u32 %s3, 4
      %s45 = int_to_ptr.hbm [resolvable:$true] %s44
      %s46 = sshll.u32 [#allocation6], 4
      %s47 = int_to_ptr.vmem [resolvable:$true] %s46
      %52 = dma.hbm_to_vmem [thread:$0]  %s45, 2048, %s47, [#allocation5], 128, 128, 8
    $region17: #{_forward_impl.1} parent=1 // pred_fallthru
      _
    // Predicated region
    $region18: #{_forward_impl.1} parent=1 // pred_check
      _
    $region19: #{_forward_impl.1} parent=1 // pred_check_branch
      %54 = sbr.rel (0) target = $region21
    $region20: #{_forward_impl.1} parent=1 // pred_region
      _
    $region21: #{_forward_impl.1} parent=1 // pred_fallthru
      _
    // Predicated region
    $region22: #{_forward_impl.1} parent=1 // pred_check
      _
    $region23: #{_forward_impl.1} parent=1 // pred_check_branch
      %56 = sbr.rel (0) target = $region25
    $region24: #{_forward_impl.1} parent=1 // pred_region
      %58 = dma.done [#allocation3], 128
    $region25: #{_forward_impl.1} parent=1 // pred_fallthru
      _
    // Predicated region
    $region26: #{_forward_impl.1} parent=1 // pred_check
      _
    $region27: #{_forward_impl.1} parent=1 // pred_check_branch
      %60 = sbr.rel (0) target = $region29
    $region28: #{_forward_impl.1} parent=1 // pred_region
      %62 = dma.done [#allocation5], 256
    $region29: #{_forward_impl.1} parent=1 // pred_fallthru
      _
    // Predicated region
    $region30: #{_forward_impl.1} parent=1 // pred_check
      _
    $region31: #{_forward_impl.1} parent=1 // pred_check_branch
      %64 = sbr.rel (0) target = $region33
    $region32: #{_forward_impl.1} parent=1 // pred_region
      %66 = dma.done [#allocation5], 2048
    $region33: #{_forward_impl.1} parent=1 // pred_fallthru
      _
    %v67 = vld [vmem:[#allocation2] sm:$0xff]
    %v68 = vld [vmem:[#allocation4] sm:$0xff]
    %v69 = vld [vmem:[#allocation4 + $0x8] sm:$0xff]
    %v70 = vld [vmem:[%s2] sm:$0x1]
    %v72 = vperm.slane %v70, 0
    %vm74 = vcmask 130048
    %v76 = vsel %vm74, %v67, 0
    %78 = vmatpush.msra.mxu0 0.0
    %79 = vmatpush.msra.mxu0 0.0
    %80 = vmatpush.msra.mxu0 0.0
    %81 = vmatpush.msra.mxu0 0.0
    %82 = vmatpush.msra.mxu0 0.0
    %83 = vmatpush.msra.mxu0 0.0
    %84 = vmatpush.msra.mxu0 0.0
    %85 = vmatpush.msra.mxu0 0.0
    %86 = vmatpush.msra.mxu0 0.0
    %87 = vmatpush.msra.mxu0 0.0
    %88 = vmatpush.msra.mxu0 0.0
    %89 = vmatpush.msra.mxu0 0.0
    %90 = vmatpush.msra.mxu0 0.0
    %91 = vmatpush.msra.mxu0 0.0
    %92 = vmatpush.msra.mxu0 %v69
    %93 = vmatpush.msra.mxu0 %v68
    %94 = vmatmul.f32.gmra.mxu0 %v76
    %v95 = vpop.f32.mrf.mxu0
    %v96 = vadd.f32 %v72, %v95
    %97 = vdwg.mxu0
    %v98 = vmax.f32 %v96, 0.0
    %v99 = vld [vmem:[#allocation6] sm:$0xff]
    %v100 = vld [vmem:[#allocation6 + $0x8] sm:$0xff]
    %v101 = vld [vmem:[#allocation6 + $0x10] sm:$0xff]
    %v102 = vld [vmem:[#allocation6 + $0x18] sm:$0xff]
    %v103 = vld [vmem:[#allocation6 + $0x20] sm:$0xff]
    %v104 = vld [vmem:[#allocation6 + $0x28] sm:$0xff]
    %v105 = vld [vmem:[#allocation6 + $0x30] sm:$0xff]
    %v106 = vld [vmem:[#allocation6 + $0x38] sm:$0xff]
    %v107 = vld [vmem:[#allocation6 + $0x40] sm:$0xff]
    %v108 = vld [vmem:[#allocation6 + $0x48] sm:$0xff]
    %v109 = vld [vmem:[#allocation6 + $0x50] sm:$0xff]
    %v110 = vld [vmem:[#allocation6 + $0x58] sm:$0xff]
    %v111 = vld [vmem:[#allocation6 + $0x60] sm:$0xff]
    %v112 = vld [vmem:[#allocation6 + $0x68] sm:$0xff]
    %v113 = vld [vmem:[#allocation6 + $0x70] sm:$0xff]
    %v114 = vld [vmem:[#allocation6 + $0x78] sm:$0xff]
    %v115 = vld [vmem:[%s4] sm:$0x1]
    %v117 = vperm.slane %v115, 0
    %119 = vmatpush.msra.mxu0 %v114
    %120 = vmatpush.msra.mxu0 %v113
    %121 = vmatpush.msra.mxu0 %v112
    %122 = vmatpush.msra.mxu0 %v111
    %123 = vmatpush.msra.mxu0 %v110
    %124 = vmatpush.msra.mxu0 %v109
    %125 = vmatpush.msra.mxu0 %v108
    %126 = vmatpush.msra.mxu0 %v107
    %127 = vmatpush.msra.mxu0 %v106
    %128 = vmatpush.msra.mxu0 %v105
    %129 = vmatpush.msra.mxu0 %v104
    %130 = vmatpush.msra.mxu0 %v103
    %131 = vmatpush.msra.mxu0 %v102
    %132 = vmatpush.msra.mxu0 %v101
    %133 = vmatpush.msra.mxu0 %v100
    %134 = vmatpush.msra.mxu0 %v99
    %135 = vmatmul.f32.gmra.mxu0 %v98
    %v136 = vpop.f32.mrf.mxu0
    %v137 = vadd.f32 %v117, %v136
    %138 = vdwg.mxu0
    %v139 = vlaneseq
    %v140 = vand.u32 %v139, 127
    %vm141 = vcmp.lt.s32.totalorder %v140, 4
    %v142 = vsel %vm141, 1, 0
    %vm143 = vcmp.eq.s32.totalorder %v142, 1
    %v144 = vsel %vm143, %v137, -inf
    %145 = vmax.xlane.f32.xlu0 %v144
    %v146 = vpop.xlane.xlu0 %145
    %v147 = vsub.f32 %v144, %v146
    %v148 = vmul.f32 %v147, 1.442695
    %v149 = vpow.pop %v148
    %150 = vadd.xlane.f32.xlu0 %v149
    %v151 = vpop.xlane.xlu0 %150
    %v152 = vrcp.pop %v151
    %v153 = vmul.f32 %v151, %v152
    %v154 = vsub.f32 2.0, %v153
    %v155 = vmul.f32 %v152, %v154
    %v156 = vmul.f32 %v149, %v155
    %vm157 = vcmask 31744
    %158 = vst.msk [vmem:[%s5] sm:$0xff] %vm157, %v156
    %160 = vrot.lane.b32.xlu0 %v137, 124
    %v161 = vpop.permute.xlu0 %160
    %vm163 = vcmask 7168
    %164 = vst.msk [vmem:[%s6] sm:$0xff] %vm163, %v161
    // Predicated region
    $region34: #{_forward_impl.1} parent=1 // pred_check
      _
    $region35: #{_forward_impl.1} parent=1 // pred_check_branch
      %166 = sbr.rel (0) target = $region37
    $region36: #{_forward_impl.1} parent=1 // pred_region
      _
    $region37: #{_forward_impl.1} parent=1 // pred_fallthru
      _
    // Predicated region
    $region38: #{_forward_impl.1} parent=1 // pred_check
      _
    $region39: #{_forward_impl.1} parent=1 // pred_check_branch
      %168 = sbr.rel (0) target = $region41
    $region40: #{_forward_impl.1} parent=1 // pred_region
      _
    $region41: #{_forward_impl.1} parent=1 // pred_fallthru
      _
    // Predicated region
    $region42: #{_forward_impl.1} parent=1 // pred_check
      _
    $region43: #{_forward_impl.1} parent=1 // pred_check_branch
      %170 = sbr.rel (0) target = $region45
    $region44: #{_forward_impl.1} parent=1 // pred_region
      _
    $region45: #{_forward_impl.1} parent=1 // pred_fallthru
      _
    // Predicated region
    $region46: #{_forward_impl.1} parent=1 // pred_check
      _
    $region47: #{_forward_impl.1} parent=1 // pred_check_branch
      %172 = sbr.rel (0) target = $region49
    $region48: #{_forward_impl.1} parent=1 // pred_region
      _
    $region49: #{_forward_impl.1} parent=1 // pred_fallthru
      _
    %173 = vsyncpa [#allocation3], 1
    %174 = vsyncpa [#allocation5], 1

</llo_original>
